<compile_context>
chip_gen: v5e
topology: v5e:2x2
jax: 0.10.0
libtpu: 0.0.40
codegen_flags: <defaults>
</compile_context>

<pallas_src>
import functools

import jax
import jax.numpy as jnp
from jax.experimental import pallas as pl
from jax.experimental.pallas import tpu as pltpu


def layernorm_kernel(x_ref, w_ref, o_ref, *, eps, inv_h):
    # x_ref: (TILE_ROWS, H), w_ref: (1, H) f32, o_ref: (TILE_ROWS, H)
    x = x_ref[...].astype(jnp.float32)
    # Two-pass, f32-accumulated statistics (block is VMEM-resident, so the
    # second sweep is hidden under the DMA slack).
    mean = jnp.sum(x, axis=-1, keepdims=True) * inv_h
    d = x - mean
    var = jnp.sum(d * d, axis=-1, keepdims=True) * inv_h   # biased, like torch
    inv = jax.lax.rsqrt(var + eps)                          # EUP slot -> ~free
    # bias=False in the reference module, so no bias add is emitted.
    o_ref[...] = (d * inv * w_ref[...]).astype(o_ref.dtype)


def _sublane_multiple(dtype) -> int:
    # Rows per packed vreg: 8 for 4-byte, 16 for 2-byte, 32 for 1-byte dtypes.
    return max(8, 32 // jnp.dtype(dtype).itemsize)


def _vmem_capacity_bytes() -> int:
    try:
        cap = int(pltpu.get_tpu_info().vmem_capacity_bytes)
    except Exception:
        cap = 64 << 20  # conservative fallback (v7x per-TensorCore VMEM)
    # Clamp to sane per-TensorCore values in case of odd reporting.
    return max(32 << 20, min(cap, 128 << 20))


def _pick_tiling(rows, H, dtype):
    """Returns (tile_rows, grid_steps, vmem_limit_bytes)."""
    sub = _sublane_multiple(dtype)
    itemsize = jnp.dtype(dtype).itemsize
    vmem_cap = _vmem_capacity_bytes()

    # Per-block byte target: bigger on v5e/v6e (128 MiB VMEM, low HBM BW),
    # smaller on v7x (64 MiB VMEM).
    block_target = (8 << 20) if vmem_cap >= (96 << 20) else (4 << 20)
    # Conservative VMEM budget: double-buffered in+out blocks plus ~4 f32
    # temporaries per element (x_f32, x-mean, its square, pre-cast output).
    budget = vmem_cap // 4
    bytes_per_row = H * (4 * itemsize + 16)

    max_tile = min(budget // max(bytes_per_row, 1),
                   block_target // max(H * itemsize, 1))
    max_tile = max(sub, (max_tile // sub) * sub)   # sublane-aligned, >= one vreg
    cap_sub = max(1, max_tile // sub)

    if rows % sub == 0:
        n_sub = rows // sub
        # >= 2 grid steps when possible so both v7x TensorCores get work.
        min_blocks = 2 if n_sub >= 2 else 1
        cap = min(cap_sub, max(1, n_sub // min_blocks))
        # Prefer a tile that divides rows exactly (no masked partial block)...
        t = next((t for t in range(cap, 0, -1) if n_sub % t == 0), 1)
        # ...unless exact division forces tiny blocks; then accept a masked
        # partial last block at the byte-targeted tile size.
        tile = (t if t * 4 >= cap else cap) * sub
    elif rows <= cap_sub * sub:
        # Ragged but fits one block: block dim == array dim (always legal),
        # no padding, no masking.
        tile = rows
    else:
        # Ragged and large: byte-targeted tile; Pallas masks the partial last
        # block (rows are independent, OOB stores are dropped).
        tile = cap_sub * sub

    grid_steps = pl.cdiv(rows, tile)

    working_set = tile * bytes_per_row + H * 4   # blocks + temps + weight
    vmem_limit = max(32 << 20, int(working_set) * 2)
    vmem_limit = min(vmem_limit, (vmem_cap * 3) // 4)   # ~48 MiB cap on v7x
    return int(tile), int(grid_steps), int(vmem_limit)


def layer_norm(x, weight, *, eps=1e-5):
    """x: (..., H); weight: (H,). Normalizes over the last axis (f32 accumulation)."""
    orig_shape = x.shape
    H = orig_shape[-1]
    rows = 1
    for d in orig_shape[:-1]:
        rows *= d

    x2 = x.reshape(rows, H)
    w2 = weight.astype(jnp.float32).reshape(1, H)   # cast once outside the kernel

    tile_rows, grid_steps, vmem_limit = _pick_tiling(rows, H, x.dtype)

    kernel = functools.partial(layernorm_kernel, eps=float(eps), inv_h=1.0 / H)
    out = pl.pallas_call(
        kernel,
        out_shape=jax.ShapeDtypeStruct((rows, H), x.dtype),
        grid_spec=pltpu.PrefetchScalarGridSpec(
            num_scalar_prefetch=0,
            grid=(grid_steps,),
            in_specs=[
                pl.BlockSpec((tile_rows, H), lambda i: (i, 0)),
                pl.BlockSpec((1, H), lambda i: (0, 0)),   # weight stays VMEM-resident
            ],
            out_specs=pl.BlockSpec((tile_rows, H), lambda i: (i, 0)),
        ),
        compiler_params=pltpu.CompilerParams(
            # Row-tile axis is embarrassingly parallel -> megacore sharding.
            dimension_semantics=("parallel",),
            vmem_limit_bytes=vmem_limit,
        ),
    )(x2, w2)

    return out.reshape(orig_shape)


def _ref_layer_norm(x, weight, eps):
    xf = x.astype(jnp.float32)
    mean = jnp.mean(xf, axis=-1, keepdims=True)
    var = jnp.mean((xf - mean) ** 2, axis=-1, keepdims=True)
    return ((xf - mean) / jnp.sqrt(var + eps) * weight.astype(jnp.float32)).astype(x.dtype)


if __name__ == "__main__":
    # Module: LayerNorm(num_features=128, eps=1e-5, weight=True, bias=False)
    batch, seq, hidden = 2, 8, 128
    key = jax.random.PRNGKey(0)
    x = jax.random.normal(key, (batch, seq, hidden), dtype=jnp.float32) * 3.0 + 1.5

    # Deterministic parameter init (matches nn.Parameter(torch.ones(num_features)))
    weight = jnp.ones((hidden,), dtype=jnp.float32)

    y = layer_norm(x, weight, eps=1e-5)
    jax.block_until_ready(y)
    ref = _ref_layer_norm(x, weight, 1e-5)
    assert jnp.allclose(y, ref, atol=1e-4, rtol=1e-4), "mismatch vs reference (f32)"

    # Ragged row count (15 rows, not a sublane multiple) -> single full-extent
    # block, no padding copy, no masked stores.
    k1, k2 = jax.random.split(key)
    x_r = jax.random.normal(k1, (3, 5, hidden), dtype=jnp.float32) * 2.0 - 0.5
    w_r = jax.random.normal(k2, (hidden,), dtype=jnp.float32) * 0.1 + 1.0
    y_r = layer_norm(x_r, w_r, eps=1e-5)
    jax.block_until_ready(y_r)
    ref_r = _ref_layer_norm(x_r, w_r, 1e-5)
    assert jnp.allclose(y_r, ref_r, atol=1e-4, rtol=1e-4), "mismatch vs reference (ragged)"

    # bf16 path (sublane packing of 16, f32 accumulation inside the kernel).
    x_b = (jax.random.normal(k2, (batch, seq, hidden), dtype=jnp.float32) * 2.0 + 0.25
           ).astype(jnp.bfloat16)
    y_b = layer_norm(x_b, weight, eps=1e-5)
    jax.block_until_ready(y_b)
    ref_b = _ref_layer_norm(x_b, weight, 1e-5)
    assert jnp.allclose(y_b.astype(jnp.float32), ref_b.astype(jnp.float32),
                        atol=3e-2, rtol=3e-2), "mismatch vs reference (bf16)"

    print("KERNEL_OK")
</pallas_src>

<mosaic_0001>
module attributes {stable_mosaic.version = 11 : i64} {
  func.func @layernorm_kernel(%arg0: i32, %arg1: memref<8x128xf32, #tpu.memory_space<vmem>>, %arg2: memref<1x128xf32, #tpu.memory_space<vmem>>, %arg3: memref<8x128xf32, #tpu.memory_space<vmem>>) attributes {dimension_semantics = [#tpu.dimension_semantics<parallel>], iteration_bounds = array<i64: 2>, scalar_prefetch = 0 : i64, scratch_operands = 0 : i64, tpu.core_type = #tpu.core_type<tc>, window_params = [{transform_indices = @transform_0, window_bounds = array<i64: 8, 128>}, {pipeline_mode = #tpu.pipeline_mode<synchronous>, transform_indices = @transform_1, window_bounds = array<i64: 1, 128>}, {transform_indices = @transform_2, window_bounds = array<i64: 8, 128>}]} {
    %c0 = arith.constant 0 : index
    %c0_0 = arith.constant 0 : index
    %0 = vector.load %arg1[%c0, %c0_0] : memref<8x128xf32, #tpu.memory_space<vmem>>, vector<8x128xf32>
    %cst = arith.constant dense<0.000000e+00> : vector<8xf32>
    %1 = vector.multi_reduction <add>, %0, %cst [1] : vector<8x128xf32> to vector<8xf32>
    %2 = vector.shape_cast %1 : vector<8xf32> to vector<8x1xf32>
    %cst_1 = arith.constant 7.812500e-03 : f32
    %3 = vector.broadcast %cst_1 : f32 to vector<8x1xf32>
    %4 = arith.mulf %2, %3 : vector<8x1xf32>
    %5 = vector.broadcast %4 : vector<8x1xf32> to vector<8x128xf32>
    %6 = arith.subf %0, %5 : vector<8x128xf32>
    %7 = arith.mulf %6, %6 : vector<8x128xf32>
    %cst_2 = arith.constant dense<0.000000e+00> : vector<8xf32>
    %8 = vector.multi_reduction <add>, %7, %cst_2 [1] : vector<8x128xf32> to vector<8xf32>
    %9 = vector.shape_cast %8 : vector<8xf32> to vector<8x1xf32>
    %cst_3 = arith.constant 7.812500e-03 : f32
    %10 = vector.broadcast %cst_3 : f32 to vector<8x1xf32>
    %11 = arith.mulf %9, %10 : vector<8x1xf32>
    %cst_4 = arith.constant 9.99999974E-6 : f32
    %12 = vector.broadcast %cst_4 : f32 to vector<8x1xf32>
    %13 = arith.addf %11, %12 : vector<8x1xf32>
    %14 = math.rsqrt %13 : vector<8x1xf32>
    %15 = vector.broadcast %14 : vector<8x1xf32> to vector<8x128xf32>
    %16 = arith.mulf %6, %15 : vector<8x128xf32>
    %c0_5 = arith.constant 0 : index
    %c0_6 = arith.constant 0 : index
    %17 = vector.load %arg2[%c0_5, %c0_6] : memref<1x128xf32, #tpu.memory_space<vmem>>, vector<1x128xf32>
    %18 = vector.broadcast %17 : vector<1x128xf32> to vector<8x128xf32>
    %19 = arith.mulf %16, %18 : vector<8x128xf32>
    %c0_7 = arith.constant 0 : index
    %c0_8 = arith.constant 0 : index
    %20 = vector.load %arg3[%c0_7, %c0_8] : memref<8x128xf32, #tpu.memory_space<vmem>>, vector<8x128xf32>
    tpu.vector_store %arg3[%c0_7, %c0_8], %19 {strides = array<i32>} : memref<8x128xf32, #tpu.memory_space<vmem>>, vector<8x128xf32>,
    return
  }
  func.func @transform_0(%arg0: i32) -> (i32, i32) {
    %c0_i32 = arith.constant 0 : i32
    %c0_i32_0 = arith.constant 0 : i32
    return %arg0, %c0_i32 : i32, i32
  }
  func.func @transform_1(%arg0: i32) -> (i32, i32) {
    %c0_i32 = arith.constant 0 : i32
    %c0_i32_0 = arith.constant 0 : i32
    %c0_i32_1 = arith.constant 0 : i32
    return %c0_i32, %c0_i32_0 : i32, i32
  }
  func.func @transform_2(%arg0: i32) -> (i32, i32) {
    %c0_i32 = arith.constant 0 : i32
    %c0_i32_0 = arith.constant 0 : i32
    return %arg0, %c0_i32 : i32, i32
  }
}

</mosaic_0001>

<llo_original>
// kernel: tpu_custom_call.1
$region0: #{tpu_custom_call.1}
  #allocation0 [shape = 'u32[]', space=smem, size = 0x4, offset = 0x4, fixed_abs, tag = 'smem constant byte address 0x4 - core index']
  #allocation1 [shape = 'u32[72,128]{1,0:T(1,128)}', space=vmem, size = 0x9000, scoped, tag = 'internal scratch']
  %s0 = inlined_call_operand.hbm [shape: f32[16,128], index: 0, kind: input, shape index: {}]
  %s1 = inlined_call_operand.hbm [shape: f32[1,128], index: 1, kind: input, shape index: {}]
  %s2 = inlined_call_operand.hbm [shape: f32[16,128], index: 2, kind: output, shape index: {}]
  %s3 = sld [smem:[#allocation0]]
  $region49: #{tpu_custom_call.1} parent=0
    _
  %s5 = ssub.s32 1, %s3
  %s6 = scalar_select 0, %s5, %s3
  $region1: #{tpu_custom_call.1} parent=0
    #allocation2 [shape = 'u8[8192]{0}', space=vmem, size = 0x2000, scoped, tag = 'input window, operand 0']
    #allocation3 [shape = 's32[2]{0}', space=sflag, size = 0x8, scoped, tag = 'scoped memory for tpu_custom_call.1']
    #allocation4 [shape = 's32[2]{0}', space=sflag, size = 0x8, scoped, tag = 'scoped memory for tpu_custom_call.1']
    #allocation5 [shape = 'u8[512]{0}', space=vmem, size = 0x400, scoped, tag = 'input window, operand 1, single buffered']
    #allocation6 [shape = 's32[1]{0}', space=sflag, size = 0x4, scoped, tag = 'scoped memory for tpu_custom_call.1']
    #allocation7 [shape = 'u8[8192]{0}', space=vmem, size = 0x2000, scoped, tag = 'output window, operand 0']
    %7 = vsyncpa [#allocation3], 0
    %s8 = scalar_lea.sflag [#allocation3], 1
    %9 = vsyncpa %s8, 0
    %10 = vsyncpa [#allocation6], 0
    %11 = vsyncpa [#allocation4], 0
    %s12 = scalar_lea.sflag [#allocation4], 1
    %13 = vsyncpa %s12, 0
    loop: start=0, step=1, limit=4
    $region2: #{tpu_custom_call.1} parent=1 // loop_pre_header
      _
    $region3: #{tpu_custom_call.1} parent=1 // loop_header
      %s15 = sphi 0, %s19
      %p16 = scmp.ge.s32.totalorder %s15, 4
      %s25 = sphi 0, %s27
      %s28 = sphi 0, %s25
      %s29 = sphi 0, %s28
      %s45 = sphi 0, %s29
      %s49 = sphi 0, %s49
      %s51 = sphi 0, %s49
      %s52 = sphi 0, %s51
      %s66 = sphi 0, %s52
      %s72 = sphi 0, %s74
      %s75 = sphi 0, %s72
      %s76 = sphi 0, %s75
      %s92 = sphi 0, %s76
    $region4: #{tpu_custom_call.1} parent=1 // loop_header_branch
      %18 = sbr.rel (%p16) target = $region8
    $region5: #{tpu_custom_call.1} parent=1 // loop_body
      %s20 = ssub.s32 %s15, 1
      %s21 = ssub.s32 %s15, 2
      %s22 = sadd.s32 %s15, 1
      %s23 = ssub.s32 %s15, %s22
      %p24 = scmp.eq.s32.totalorder %s23, 0
      %s26 = sadd.s32 %s25, 1
      %s27 = scalar_select %p24, %s25, %s26
      %p30 = pneg %p24
      %p31 = scmp.eq.s32.totalorder %s15, 1
      %p32 = por %p30, %p31
      %p33 = scmp.ne.s32.totalorder %s25, %s28
      %p34 = scmp.eq.s32.totalorder %s15, 0
      %p35 = por %p33, %p34
      %p36 = scmp.ne.s32.totalorder %s25, %s28
      %p37 = scmp.eq.s32.totalorder %s20, 1
      %p38 = por %p36, %p37
      %p39 = scmp.ne.s32.totalorder %s28, %s29
      %p40 = scmp.eq.s32.totalorder %s20, 0
      %p41 = por %p39, %p40
      %p42 = scmp.ne.s32.totalorder %s28, %s29
      %p43 = scmp.eq.s32.totalorder %s21, 1
      %p44 = por %p42, %p43
      %p46 = scmp.ne.s32.totalorder %s29, %s45
      %p47 = scmp.eq.s32.totalorder %s21, 0
      %p48 = por %p46, %p47
      %s50 = sadd.s32 %s49, 1
      %p53 = scmp.eq.s32.totalorder %s15, 1
      %p54 = scmp.ne.s32.totalorder %s49, %s51
      %p55 = scmp.eq.s32.totalorder %s15, 0
      %p56 = por %p54, %p55
      %p57 = scmp.ne.s32.totalorder %s49, %s51
      %p58 = scmp.eq.s32.totalorder %s20, 1
      %p59 = por %p57, %p58
      %p60 = scmp.ne.s32.totalorder %s51, %s52
      %p61 = scmp.eq.s32.totalorder %s20, 0
      %p62 = por %p60, %p61
      %p63 = scmp.ne.s32.totalorder %s51, %s52
      %p64 = scmp.eq.s32.totalorder %s21, 1
      %p65 = por %p63, %p64
      %p67 = scmp.ne.s32.totalorder %s52, %s66
      %p68 = scmp.eq.s32.totalorder %s21, 0
      %p69 = por %p67, %p68
      %s70 = ssub.s32 %s15, %s22
      %p71 = scmp.eq.s32.totalorder %s70, 0
      %s73 = sadd.s32 %s72, 1
      %s74 = scalar_select %p71, %s72, %s73
      %p77 = pneg %p71
      %p78 = scmp.eq.s32.totalorder %s15, 1
      %p79 = por %p77, %p78
      %p80 = scmp.ne.s32.totalorder %s72, %s75
      %p81 = scmp.eq.s32.totalorder %s15, 0
      %p82 = por %p80, %p81
      %p83 = scmp.ne.s32.totalorder %s72, %s75
      %p84 = scmp.eq.s32.totalorder %s20, 1
      %p85 = por %p83, %p84
      %p86 = scmp.ne.s32.totalorder %s75, %s76
      %p87 = scmp.eq.s32.totalorder %s20, 0
      %p88 = por %p86, %p87
      %p89 = scmp.ne.s32.totalorder %s75, %s76
      %p90 = scmp.eq.s32.totalorder %s21, 1
      %p91 = por %p89, %p90
      %p93 = scmp.ne.s32.totalorder %s76, %s92
      %p94 = scmp.eq.s32.totalorder %s21, 0
      %p95 = por %p93, %p94
      %p96 = scmp.le.s32.totalorder 1, %s15
      %p97 = scmp.lt.s32.totalorder %s15, 3
      %p98 = pnand %p96, %p97
      %p99 = pneg %p98
      // Predicated region
      $region9: #{tpu_custom_call.1} parent=5 // pred_check
        _
      $region10: #{tpu_custom_call.1} parent=5 // pred_check_branch
        %101 = sbr.rel (%p98) target = $region12
      $region11: #{tpu_custom_call.1} parent=5 // pred_region
        %s102 = ssub.s32 %s15, 1
        // Predicated region
        $region13: #{tpu_custom_call.1} parent=11 // pred_check
          %p103 = pneg %p62
        $region14: #{tpu_custom_call.1} parent=11 // pred_check_branch
          %105 = sbr.rel (%p103) target = $region16
        $region15: #{tpu_custom_call.1} parent=11 // pred_region
          %107 = vsyncadd [#allocation6], 0
          %s109 = sshll.u32 %s1, 4
          %s110 = int_to_ptr.hbm [resolvable:$true] %s109
          %s111 = sshll.u32 [#allocation5], 4
          %s112 = int_to_ptr.vmem [resolvable:$true] %s111
          %114 = dma.hbm_to_vmem [thread:$0]  %s110, 16, %s112, [#allocation6]
        $region16: #{tpu_custom_call.1} parent=11 // pred_fallthru
          _
      $region12: #{tpu_custom_call.1} parent=5 // pred_fallthru
        _
      %p115 = scmp.lt.s32.totalorder %s15, 2
      // Predicated region
      $region17: #{tpu_custom_call.1} parent=5 // pred_check
        %p116 = pneg %p115
      $region18: #{tpu_custom_call.1} parent=5 // pred_check_branch
        %118 = sbr.rel (%p116) target = $region20
      $region19: #{tpu_custom_call.1} parent=5 // pred_region
        // Predicated region
        $region21: #{tpu_custom_call.1} parent=19 // pred_check
          %p119 = pneg %p35
        $region22: #{tpu_custom_call.1} parent=19 // pred_check_branch
          %121 = sbr.rel (%p119) target = $region24
        $region23: #{tpu_custom_call.1} parent=19 // pred_region
          %s122 = sand.u32 %s25, 1
          %s123 = scalar_lea.sflag [#allocation3], %s122
          %s124 = sand.u32 %s25, 1
          %s125 = smul.addr %s124, 8
          %s126 = scalar_lea.vmem [#allocation2], %s125
          %128 = vsyncadd %s123, 0
          %s129 = smul.addr %s15, 8
          %s130 = scalar_lea.hbm %s0, %s129
          %s132 = sshll.u32 %s130, 4
          %s133 = int_to_ptr.hbm [resolvable:$true] %s132
          %s134 = sshll.u32 %s126, 4
          %s135 = int_to_ptr.vmem [resolvable:$true] %s134
          %137 = dma.hbm_to_vmem [thread:$0]  %s133, 128, %s135, %s123
        $region24: #{tpu_custom_call.1} parent=19 // pred_fallthru
          _
      $region20: #{tpu_custom_call.1} parent=5 // pred_fallthru
        _
      %p138 = scmp.le.s32.totalorder 1, %s15
      %p139 = scmp.lt.s32.totalorder %s15, 3
      %p140 = pnand %p138, %p139
      %p141 = pneg %p140
      // Predicated region
      $region25: #{tpu_custom_call.1} parent=5 // pred_check
        _
      $region26: #{tpu_custom_call.1} parent=5 // pred_check_branch
        %143 = sbr.rel (%p140) target = $region28
      $region27: #{tpu_custom_call.1} parent=5 // pred_region
        %s144 = ssub.s32 %s15, 1
        %s145 = sand.u32 %s28, 1
        %s146 = scalar_lea.sflag [#allocation3], %s145
        %s147 = sand.u32 %s28, 1
        %s148 = smul.addr %s147, 8
        %s149 = scalar_lea.vmem [#allocation2], %s148
        // Predicated region
        $region29: #{tpu_custom_call.1} parent=27 // pred_check
          %p150 = pneg %p41
        $region30: #{tpu_custom_call.1} parent=27 // pred_check_branch
          %152 = sbr.rel (%p150) target = $region32
        $region31: #{tpu_custom_call.1} parent=27 // pred_region
          %154 = dma.done %s146, 128
        $region32: #{tpu_custom_call.1} parent=27 // pred_fallthru
          _
        // Predicated region
        $region33: #{tpu_custom_call.1} parent=27 // pred_check
          %p155 = pneg %p62
        $region34: #{tpu_custom_call.1} parent=27 // pred_check_branch
          %157 = sbr.rel (%p155) target = $region36
        $region35: #{tpu_custom_call.1} parent=27 // pred_region
          %159 = dma.done [#allocation6], 16
        $region36: #{tpu_custom_call.1} parent=27 // pred_fallthru
          _
        %s160 = sand.u32 %s28, 1
        %s161 = scalar_lea.sflag [#allocation3], %s160
        %s162 = sand.u32 %s28, 1
        %s163 = smul.addr %s162, 8
        %s164 = scalar_lea.vmem [#allocation2], %s163
        %p165 = pneg %p41
        %p166 = pneg %p38
        %p167 = pneg %p62
        %p168 = pneg %p59
        %p169 = pneg %p88
        %p170 = pneg %p85
        %s171 = sand.u32 %s75, 1
        %s172 = scalar_lea.sflag [#allocation4], %s171
        %s173 = sand.u32 %s75, 1
        %s174 = smul.addr %s173, 8
        %s175 = scalar_lea.vmem [#allocation7], %s174
        %v176 = vld [vmem:[%s149] sm:$0xff]
        %177 = vadd.xlane.f32.xlu0 %v176
        %v178 = vpop.xlane.xlu0 %177
        %v179 = vmul.f32 %v178, 0.0078125
        %v180 = vsub.f32 %v176, %v179
        %v181 = vmul.f32 %v180, %v180
        %182 = vadd.xlane.f32.xlu0 %v181
        %v183 = vpop.xlane.xlu0 %182
        %v184 = vmul.f32 %v183, 0.0078125
        %v185 = vadd.f32 %v184, 1e-05
        %v186 = vrsqrt.pop %v185
        %v187 = vmul.f32 %v186, %v185
        %v188 = vmul.f32 %v187, %v186
        %v189 = vmul.f32 0.5, %v188
        %v190 = vsub.f32 1.5, %v189
        %v191 = vmul.f32 %v186, %v190
        %vm192 = vweird.f32 %v185
        %vm193 = vweird.f32 %v186
        %vm194 = vmor %vm192, %vm193
        %v195 = vsel %vm194, %v186, %v191
        %v196 = vmul.f32 %v180, %v195
        %v197 = vld [vmem:[#allocation5] sm:$0x1]
        %v199 = vperm.slane %v197, 0
        %v201 = vmul.f32 %v196, %v199
        %202 = vst [vmem:[%s175] sm:$0xff] %v201
        %s203 = sand.u32 %s75, 1
        %s204 = scalar_lea.sflag [#allocation4], %s203
        %s205 = sand.u32 %s75, 1
        %s206 = smul.addr %s205, 8
        %s207 = scalar_lea.vmem [#allocation7], %s206
        // Predicated region
        $region37: #{tpu_custom_call.1} parent=27 // pred_check
          %p208 = pneg %p85
        $region38: #{tpu_custom_call.1} parent=27 // pred_check_branch
          %210 = sbr.rel (%p208) target = $region40
        $region39: #{tpu_custom_call.1} parent=27 // pred_region
          %212 = vsyncadd %s204, 0
          %s213 = smul.addr %s20, 8
          %s214 = scalar_lea.hbm %s2, %s213
          %s216 = sshll.u32 %s207, 4
          %s217 = int_to_ptr.vmem [resolvable:$true] %s216
          %s218 = sshll.u32 %s214, 4
          %s219 = int_to_ptr.hbm [resolvable:$true] %s218
          %221 = dma.vmem_to_hbm [thread:$0]  %s217, 128, %s219, %s204
        $region40: #{tpu_custom_call.1} parent=27 // pred_fallthru
          _
      $region28: #{tpu_custom_call.1} parent=5 // pred_fallthru
        _
      %p222 = scmp.le.s32.totalorder 2, %s15
      // Predicated region
      $region41: #{tpu_custom_call.1} parent=5 // pred_check
        %p223 = pneg %p222
      $region42: #{tpu_custom_call.1} parent=5 // pred_check_branch
        %225 = sbr.rel (%p223) target = $region44
      $region43: #{tpu_custom_call.1} parent=5 // pred_region
        %s226 = ssub.s32 %s15, 2
        // Predicated region
        $region45: #{tpu_custom_call.1} parent=43 // pred_check
          %p227 = pneg %p91
        $region46: #{tpu_custom_call.1} parent=43 // pred_check_branch
          %229 = sbr.rel (%p227) target = $region48
        $region47: #{tpu_custom_call.1} parent=43 // pred_region
          %s230 = sand.u32 %s76, 1
          %s231 = scalar_lea.sflag [#allocation4], %s230
          %s232 = sand.u32 %s76, 1
          %s233 = smul.addr %s232, 8
          %s234 = scalar_lea.vmem [#allocation7], %s233
          %236 = dma.done %s231, 128
        $region48: #{tpu_custom_call.1} parent=43 // pred_fallthru
          _
      $region44: #{tpu_custom_call.1} parent=5 // pred_fallthru
        _
    $region6: #{tpu_custom_call.1} parent=1 // loop_footer
      %s19 = sadd.s32 1, %s15
    $region7: #{tpu_custom_call.1} parent=1 // loop_footer_branch
      %14 = sbr.rel target = $region3
    $region8: #{tpu_custom_call.1} parent=1 // loop_exit
      _
    %237 = vsyncpa [#allocation3], 1
    %s238 = scalar_lea.sflag [#allocation3], 1
    %239 = vsyncpa %s238, 1
    %240 = vsyncpa [#allocation6], 1
    %241 = vsyncpa [#allocation4], 1
    %s242 = scalar_lea.sflag [#allocation4], 1
    %243 = vsyncpa %s242, 1

</llo_original>
